<compile_context>
chip_gen: v5e
topology: v5e:2x2
jax: 0.10.0
libtpu: 0.0.40
codegen_flags: <defaults>
</compile_context>

<pallas_src>
import jax
import jax.numpy as jnp
from jax.experimental import pallas as pl
from jax.experimental.pallas import tpu as pltpu

HIDDEN = 300
HIDDEN_PAD = 384      # next multiple of 128 (clean MXU K tiling, unmasked VPU ops)
MAX_TB = 256          # batch tile: matches v6e/v7x 256-row MXU (fine on v5e too)


def _round_up(v, m):
    return ((v + m - 1) // m) * m


def _predictor_kernel(x_ref, w1_ref, w2_ref, w3_ref, wc_ref, bias_ref, out_ref):
    # Fold the f32 -> bf16 input cast into the kernel (saves a standalone XLA convert launch).
    x = x_ref[...].astype(jnp.bfloat16)
    bias = bias_ref[...]                      # (4, HIDDEN_PAD) f32; rows = b1,b2,b3,bc

    # Layer 1: Linear -> ReLU   (bf16 operands, f32 MXU accumulation)
    h = jnp.dot(x, w1_ref[...], preferred_element_type=jnp.float32)
    h = jnp.maximum(h + bias[0:1, :], 0.0).astype(jnp.bfloat16)

    # Layer 2: Linear -> ReLU
    h = jnp.dot(h, w2_ref[...], preferred_element_type=jnp.float32)
    h = jnp.maximum(h + bias[1:2, :], 0.0).astype(jnp.bfloat16)

    # Layer 3: Linear -> ReLU
    h = jnp.dot(h, w3_ref[...], preferred_element_type=jnp.float32)
    h = jnp.maximum(h + bias[2:3, :], 0.0).astype(jnp.bfloat16)

    # Dropout(0.5): identity in eval mode.

    # Classifier: Linear(300 -> num_classes); wc padded to a small multiple of 8 columns,
    # the padding is dropped here so out_ref is exactly (tb, num_classes).
    logits = jnp.dot(h, wc_ref[...], preferred_element_type=jnp.float32)
    logits = logits + bias[3:4, :logits.shape[-1]]
    out_ref[...] = logits[:, :out_ref.shape[-1]].astype(out_ref.dtype)


def _zero_pad(a, shape):
    out = jnp.zeros(shape, a.dtype)
    return out.at[tuple(slice(0, s) for s in a.shape)].set(a)


def prepare_padded_params(params):
    """Pad hidden 300->384 (zeros), classes -> multiple of 8; weights bf16, biases packed f32."""
    input_dim = params["w1"].shape[0]
    num_classes = params["wc"].shape[1]
    classes_pad = max(8, _round_up(num_classes, 8))

    bias = jnp.zeros((4, HIDDEN_PAD), jnp.float32)
    bias = bias.at[0, :HIDDEN].set(params["b1"].reshape(-1))
    bias = bias.at[1, :HIDDEN].set(params["b2"].reshape(-1))
    bias = bias.at[2, :HIDDEN].set(params["b3"].reshape(-1))
    bias = bias.at[3, :num_classes].set(params["bc"].reshape(-1))

    padded = dict(
        w1=_zero_pad(params["w1"], (input_dim, HIDDEN_PAD)).astype(jnp.bfloat16),
        w2=_zero_pad(params["w2"], (HIDDEN_PAD, HIDDEN_PAD)).astype(jnp.bfloat16),
        w3=_zero_pad(params["w3"], (HIDDEN_PAD, HIDDEN_PAD)).astype(jnp.bfloat16),
        wc=_zero_pad(params["wc"], (HIDDEN_PAD, classes_pad)).astype(jnp.bfloat16),
        bias=bias,
    )
    return padded, num_classes


def predictor_forward(x, gx, padded_params, num_classes):
    """Pallas equivalent of Predictor.forward(x, gx).  `gx` is unused (as in PyTorch)."""
    del gx  # forward() never touches gx

    w1 = padded_params["w1"]
    w2 = padded_params["w2"]
    w3 = padded_params["w3"]
    wc = padded_params["wc"]
    bias = padded_params["bias"]
    input_dim = w1.shape[0]
    classes_pad = wc.shape[1]

    b = x.shape[0]
    # x.view(B, input_dim): contiguous row-major reshape -> metadata-only, no extra launch.
    x2d = x.reshape(b, input_dim)

    # Batch tiling: single tile for small B; 256-row tiles (full MXU rows) for large B.
    tb = _round_up(b, 8) if b <= MAX_TB else MAX_TB
    b_pad = _round_up(b, tb)
    if b_pad != b:
        x2d = jnp.pad(x2d, ((0, b_pad - b), (0, 0)))
    num_tiles = b_pad // tb

    # Weights/biases use constant index_maps -> DMA'd once, VMEM-resident across grid steps.
    const2d = lambda a: pl.BlockSpec(a.shape, lambda i: (0, 0))

    flops = 2 * b_pad * (input_dim * HIDDEN_PAD
                         + 2 * HIDDEN_PAD * HIDDEN_PAD
                         + HIDDEN_PAD * classes_pad)
    bytes_accessed = int(
        x2d.size * x2d.dtype.itemsize
        + sum(int(a.size) * a.dtype.itemsize for a in (w1, w2, w3, wc, bias))
        + b_pad * num_classes * 4
    )

    out = pl.pallas_call(
        _predictor_kernel,
        out_shape=jax.ShapeDtypeStruct((b_pad, num_classes), jnp.float32),
        grid=(num_tiles,),
        in_specs=[
            pl.BlockSpec((tb, input_dim), lambda i: (i, 0)),   # x tile pipelines over batch
            const2d(w1), const2d(w2), const2d(w3), const2d(wc), const2d(bias),
        ],
        out_specs=pl.BlockSpec((tb, num_classes), lambda i: (i, 0)),
        compiler_params=pltpu.CompilerParams(dimension_semantics=("parallel",)),
        cost_estimate=pl.CostEstimate(flops=flops, transcendentals=0,
                                      bytes_accessed=bytes_accessed),
    )(x2d, w1, w2, w3, wc, bias)

    return out if b_pad == b else out[:b]


def init_params(input_dim, hidden=HIDDEN, num_classes=4, seed=0):
    """Deterministic synthetic fp32 parameters with the module's shapes (PyTorch-like init)."""
    key = jax.random.PRNGKey(seed)
    ks = jax.random.split(key, 8)

    def lin(kw, kb, fan_in, fan_out):
        bound = 1.0 / jnp.sqrt(fan_in)
        w = jax.random.uniform(kw, (fan_in, fan_out), jnp.float32, -bound, bound)
        b = jax.random.uniform(kb, (1, fan_out), jnp.float32, -bound, bound)
        return w, b

    w1, b1 = lin(ks[0], ks[1], input_dim, hidden)
    w2, b2 = lin(ks[2], ks[3], hidden, hidden)
    w3, b3 = lin(ks[4], ks[5], hidden, hidden)
    wc, bc = lin(ks[6], ks[7], hidden, num_classes)
    return dict(w1=w1, b1=b1, w2=w2, b2=b2, w3=w3, b3=b3, wc=wc, bc=bc)


def _reference_forward_bf16(x, params):
    """Plain-JAX reference following the same bf16-operand / f32-accumulate path."""
    h = x.reshape(x.shape[0], params["w1"].shape[0]).astype(jnp.bfloat16)
    for wk, bk in (("w1", "b1"), ("w2", "b2"), ("w3", "b3")):
        h = jnp.dot(h, params[wk].astype(jnp.bfloat16),
                    preferred_element_type=jnp.float32)
        h = jnp.maximum(h + params[bk], 0.0).astype(jnp.bfloat16)
    out = jnp.dot(h, params["wc"].astype(jnp.bfloat16),
                  preferred_element_type=jnp.float32)
    return out + params["bc"]


if __name__ == "__main__":
    batch = 8
    input_dim = 64
    num_classes = 4

    key = jax.random.PRNGKey(0)
    kx, kg, kx2 = jax.random.split(key, 3)
    # x may come in as e.g. (B, 4, 16) and be flattened by .view -> (B, 64)
    x = jax.random.normal(kx, (batch, 4, 16), jnp.float32)
    gx = jax.random.normal(kg, (batch, input_dim), jnp.float32)  # unused in forward

    params = init_params(input_dim, hidden=HIDDEN, num_classes=num_classes, seed=0)
    padded_params, n_cls = prepare_padded_params(params)

    out = predictor_forward(x, gx, padded_params, n_cls)
    out = jax.block_until_ready(out)

    ref = _reference_forward_bf16(x, params)
    assert out.shape == (batch, num_classes), out.shape
    assert jnp.allclose(out, ref, atol=2e-2, rtol=2e-2), "mismatch vs reference (small batch)"

    # Sanity-check the batch-tiled path (grid > 1, padded batch, resident weights).
    big_batch = 300
    xb = jax.random.normal(kx2, (big_batch, 4, 16), jnp.float32)
    out_big = jax.block_until_ready(
        predictor_forward(xb, None, padded_params, n_cls))
    ref_big = _reference_forward_bf16(xb, params)
    assert out_big.shape == (big_batch, num_classes), out_big.shape
    assert jnp.allclose(out_big, ref_big, atol=2e-2, rtol=2e-2), "mismatch vs reference (tiled batch)"

    print("KERNEL_OK")
</pallas_src>

<mosaic_0001>
module attributes {stable_mosaic.version = 11 : i64} {
  func.func @_predictor_kernel(%arg0: i32, %arg1: memref<8x64xf32, #tpu.memory_space<vmem>>, %arg2: memref<64x384xbf16, #tpu.memory_space<vmem>>, %arg3: memref<384x384xbf16, #tpu.memory_space<vmem>>, %arg4: memref<384x384xbf16, #tpu.memory_space<vmem>>, %arg5: memref<384x8xbf16, #tpu.memory_space<vmem>>, %arg6: memref<4x384xf32, #tpu.memory_space<vmem>>, %arg7: memref<8x4xf32, #tpu.memory_space<vmem>>) attributes {dimension_semantics = [#tpu.dimension_semantics<parallel>], iteration_bounds = array<i64: 1>, scalar_prefetch = 0 : i64, scratch_operands = 0 : i64, tpu.core_type = #tpu.core_type<tc>, window_params = [{transform_indices = @transform_0, window_bounds = array<i64: 8, 64>}, {pipeline_mode = #tpu.pipeline_mode<synchronous>, transform_indices = @transform_1, window_bounds = array<i64: 64, 384>}, {pipeline_mode = #tpu.pipeline_mode<synchronous>, transform_indices = @transform_2, window_bounds = array<i64: 384, 384>}, {pipeline_mode = #tpu.pipeline_mode<synchronous>, transform_indices = @transform_3, window_bounds = array<i64: 384, 384>}, {pipeline_mode = #tpu.pipeline_mode<synchronous>, transform_indices = @transform_4, window_bounds = array<i64: 384, 8>}, {pipeline_mode = #tpu.pipeline_mode<synchronous>, transform_indices = @transform_5, window_bounds = array<i64: 4, 384>}, {transform_indices = @transform_6, window_bounds = array<i64: 8, 4>}]} {
    %c0 = arith.constant 0 : index
    %c0_0 = arith.constant 0 : index
    %0 = vector.load %arg1[%c0, %c0_0] : memref<8x64xf32, #tpu.memory_space<vmem>>, vector<8x64xf32>
    %1 = arith.truncf %0 : vector<8x64xf32> to vector<8x64xbf16>
    %c0_1 = arith.constant 0 : index
    %c0_2 = arith.constant 0 : index
    %2 = vector.load %arg6[%c0_1, %c0_2] : memref<4x384xf32, #tpu.memory_space<vmem>>, vector<4x384xf32>
    %c0_3 = arith.constant 0 : index
    %c0_4 = arith.constant 0 : index
    %3 = vector.load %arg2[%c0_3, %c0_4] : memref<64x384xbf16, #tpu.memory_space<vmem>>, vector<64x384xbf16>
    %cst = arith.constant dense<0.000000e+00> : vector<8x384xf32>
    %4 = tpu.matmul %1, %3, %cst {dimension_numbers = #tpu.dot_dimension_numbers<[1], [0], [0], [1], [0, 0, 1, 1], [], []>} : vector<8x64xbf16>, vector<64x384xbf16>, vector<8x384xf32> -> vector<8x384xf32>
    %5 = vector.extract_strided_slice %2 {offsets = [0, 0], sizes = [1, 384], strides = [1, 1]} : vector<4x384xf32> to vector<1x384xf32>
    %6 = vector.broadcast %5 : vector<1x384xf32> to vector<8x384xf32>
    %7 = arith.addf %4, %6 : vector<8x384xf32>
    %cst_5 = arith.constant 0.000000e+00 : f32
    %8 = vector.broadcast %cst_5 : f32 to vector<8x384xf32>
    %9 = arith.maximumf %7, %8 : vector<8x384xf32>
    %10 = arith.truncf %9 : vector<8x384xf32> to vector<8x384xbf16>
    %c0_6 = arith.constant 0 : index
    %c0_7 = arith.constant 0 : index
    %11 = vector.load %arg3[%c0_6, %c0_7] : memref<384x384xbf16, #tpu.memory_space<vmem>>, vector<384x384xbf16>
    %cst_8 = arith.constant dense<0.000000e+00> : vector<8x384xf32>
    %12 = tpu.matmul %10, %11, %cst_8 {dimension_numbers = #tpu.dot_dimension_numbers<[1], [0], [0], [1], [0, 0, 1, 1], [], []>} : vector<8x384xbf16>, vector<384x384xbf16>, vector<8x384xf32> -> vector<8x384xf32>
    %13 = vector.extract_strided_slice %2 {offsets = [1, 0], sizes = [1, 384], strides = [1, 1]} : vector<4x384xf32> to vector<1x384xf32>
    %14 = vector.broadcast %13 : vector<1x384xf32> to vector<8x384xf32>
    %15 = arith.addf %12, %14 : vector<8x384xf32>
    %cst_9 = arith.constant 0.000000e+00 : f32
    %16 = vector.broadcast %cst_9 : f32 to vector<8x384xf32>
    %17 = arith.maximumf %15, %16 : vector<8x384xf32>
    %18 = arith.truncf %17 : vector<8x384xf32> to vector<8x384xbf16>
    %c0_10 = arith.constant 0 : index
    %c0_11 = arith.constant 0 : index
    %19 = vector.load %arg4[%c0_10, %c0_11] : memref<384x384xbf16, #tpu.memory_space<vmem>>, vector<384x384xbf16>
    %cst_12 = arith.constant dense<0.000000e+00> : vector<8x384xf32>
    %20 = tpu.matmul %18, %19, %cst_12 {dimension_numbers = #tpu.dot_dimension_numbers<[1], [0], [0], [1], [0, 0, 1, 1], [], []>} : vector<8x384xbf16>, vector<384x384xbf16>, vector<8x384xf32> -> vector<8x384xf32>
    %21 = vector.extract_strided_slice %2 {offsets = [2, 0], sizes = [1, 384], strides = [1, 1]} : vector<4x384xf32> to vector<1x384xf32>
    %22 = vector.broadcast %21 : vector<1x384xf32> to vector<8x384xf32>
    %23 = arith.addf %20, %22 : vector<8x384xf32>
    %cst_13 = arith.constant 0.000000e+00 : f32
    %24 = vector.broadcast %cst_13 : f32 to vector<8x384xf32>
    %25 = arith.maximumf %23, %24 : vector<8x384xf32>
    %26 = arith.truncf %25 : vector<8x384xf32> to vector<8x384xbf16>
    %c0_14 = arith.constant 0 : index
    %c0_15 = arith.constant 0 : index
    %27 = vector.load %arg5[%c0_14, %c0_15] : memref<384x8xbf16, #tpu.memory_space<vmem>>, vector<384x8xbf16>
    %cst_16 = arith.constant dense<0.000000e+00> : vector<8x8xf32>
    %28 = tpu.matmul %26, %27, %cst_16 {dimension_numbers = #tpu.dot_dimension_numbers<[1], [0], [0], [1], [0, 0, 1, 1], [], []>} : vector<8x384xbf16>, vector<384x8xbf16>, vector<8x8xf32> -> vector<8x8xf32>
    %29 = vector.extract_strided_slice %2 {offsets = [3, 0], sizes = [1, 8], strides = [1, 1]} : vector<4x384xf32> to vector<1x8xf32>
    %30 = vector.broadcast %29 : vector<1x8xf32> to vector<8x8xf32>
    %31 = arith.addf %28, %30 : vector<8x8xf32>
    %32 = vector.extract_strided_slice %31 {offsets = [0, 0], sizes = [8, 4], strides = [1, 1]} : vector<8x8xf32> to vector<8x4xf32>
    %c0_17 = arith.constant 0 : index
    %c0_18 = arith.constant 0 : index
    %33 = vector.load %arg7[%c0_17, %c0_18] : memref<8x4xf32, #tpu.memory_space<vmem>>, vector<8x4xf32>
    tpu.vector_store %arg7[%c0_17, %c0_18], %32 {strides = array<i32>} : memref<8x4xf32, #tpu.memory_space<vmem>>, vector<8x4xf32>,
    return
  }
  func.func @transform_0(%arg0: i32) -> (i32, i32) {
    %c0_i32 = arith.constant 0 : i32
    %c0_i32_0 = arith.constant 0 : i32
    return %arg0, %c0_i32 : i32, i32
  }
  func.func @transform_1(%arg0: i32) -> (i32, i32) {
    %c0_i32 = arith.constant 0 : i32
    %c0_i32_0 = arith.constant 0 : i32
    %c0_i32_1 = arith.constant 0 : i32
    return %c0_i32, %c0_i32_0 : i32, i32
  }
  func.func @transform_2(%arg0: i32) -> (i32, i32) {
    %c0_i32 = arith.constant 0 : i32
    %c0_i32_0 = arith.constant 0 : i32
    %c0_i32_1 = arith.constant 0 : i32
    return %c0_i32, %c0_i32_0 : i32, i32
  }
  func.func @transform_3(%arg0: i32) -> (i32, i32) {
    %c0_i32 = arith.constant 0 : i32
    %c0_i32_0 = arith.constant 0 : i32
    %c0_i32_1 = arith.constant 0 : i32
    return %c0_i32, %c0_i32_0 : i32, i32
  }
  func.func @transform_4(%arg0: i32) -> (i32, i32) {
    %c0_i32 = arith.constant 0 : i32
    %c0_i32_0 = arith.constant 0 : i32
    %c0_i32_1 = arith.constant 0 : i32
    return %c0_i32, %c0_i32_0 : i32, i32
  }
  func.func @transform_5(%arg0: i32) -> (i32, i32) {
    %c0_i32 = arith.constant 0 : i32
    %c0_i32_0 = arith.constant 0 : i32
    %c0_i32_1 = arith.constant 0 : i32
    return %c0_i32, %c0_i32_0 : i32, i32
  }
  func.func @transform_6(%arg0: i32) -> (i32, i32) {
    %c0_i32 = arith.constant 0 : i32
    %c0_i32_0 = arith.constant 0 : i32
    return %arg0, %c0_i32 : i32, i32
  }
}

</mosaic_0001>

<llo_original>
// kernel: tpu_custom_call.1
$region0: #{tpu_custom_call.1}
  #allocation0 [shape = 'u32[]', space=smem, size = 0x4, offset = 0x4, fixed_abs, tag = 'smem constant byte address 0x4 - core index']
  #allocation1 [shape = 'u32[72,128]{1,0:T(1,128)}', space=vmem, size = 0x9000, scoped, tag = 'internal scratch']
  %s0 = inlined_call_operand.vmem [shape: f32[8,64], index: 0, kind: input, shape index: {}]
  %s1 = inlined_call_operand.vmem [shape: bf16[64,384], index: 1, kind: input, shape index: {}]
  %s2 = inlined_call_operand.hbm [shape: bf16[384,384], index: 2, kind: input, shape index: {}]
  %s3 = inlined_call_operand.hbm [shape: bf16[384,384], index: 3, kind: input, shape index: {}]
  %s4 = inlined_call_operand.vmem [shape: bf16[384,8], index: 4, kind: input, shape index: {}]
  %s5 = inlined_call_operand.vmem [shape: f32[4,384], index: 5, kind: input, shape index: {}]
  %s6 = inlined_call_operand.vmem [shape: f32[8,4], index: 6, kind: output, shape index: {}]
  %s7 = sld [smem:[#allocation0]]
  $region42: #{tpu_custom_call.1} parent=0
    _
  %s9 = ssub.s32 1, %s7
  %s10 = scalar_select 0, %s9, %s7
  $region1: #{tpu_custom_call.1} parent=0
    #allocation2 [shape = 'u8[294912]{0}', space=vmem, size = 0x48000, scoped, tag = 'input window, operand 2, single buffered']
    #allocation3 [shape = 's32[1]{0}', space=sflag, size = 0x4, scoped, tag = 'scoped memory for tpu_custom_call.1']
    #allocation4 [shape = 'u8[294912]{0}', space=vmem, size = 0x48000, scoped, tag = 'input window, operand 3, single buffered']
    #allocation5 [shape = 's32[1]{0}', space=sflag, size = 0x4, scoped, tag = 'scoped memory for tpu_custom_call.1']
    %11 = vsyncpa [#allocation3], 0
    %12 = vsyncpa [#allocation5], 0
    // Predicated region
    $region2: #{tpu_custom_call.1} parent=1 // pred_check
      _
    $region3: #{tpu_custom_call.1} parent=1 // pred_check_branch
      %14 = sbr.rel (0) target = $region5
    $region4: #{tpu_custom_call.1} parent=1 // pred_region
      _
    $region5: #{tpu_custom_call.1} parent=1 // pred_fallthru
      _
    // Predicated region
    $region6: #{tpu_custom_call.1} parent=1 // pred_check
      _
    $region7: #{tpu_custom_call.1} parent=1 // pred_check_branch
      %16 = sbr.rel (0) target = $region9
    $region8: #{tpu_custom_call.1} parent=1 // pred_region
      _
    $region9: #{tpu_custom_call.1} parent=1 // pred_fallthru
      _
    // Predicated region
    $region10: #{tpu_custom_call.1} parent=1 // pred_check
      _
    $region11: #{tpu_custom_call.1} parent=1 // pred_check_branch
      %18 = sbr.rel (0) target = $region13
    $region12: #{tpu_custom_call.1} parent=1 // pred_region
      %20 = vsyncadd [#allocation3], 0
      %s21 = sshll.u32 %s2, 4
      %s22 = int_to_ptr.hbm [resolvable:$true] %s21
      %s23 = sshll.u32 [#allocation2], 4
      %s24 = int_to_ptr.vmem [resolvable:$true] %s23
      %29 = dma.hbm_to_vmem [thread:$0]  %s22, 9216, %s24, [#allocation3], 192, 192, 12
    $region13: #{tpu_custom_call.1} parent=1 // pred_fallthru
      _
    // Predicated region
    $region14: #{tpu_custom_call.1} parent=1 // pred_check
      _
    $region15: #{tpu_custom_call.1} parent=1 // pred_check_branch
      %31 = sbr.rel (0) target = $region17
    $region16: #{tpu_custom_call.1} parent=1 // pred_region
      %33 = vsyncadd [#allocation5], 0
      %s34 = sshll.u32 %s3, 4
      %s35 = int_to_ptr.hbm [resolvable:$true] %s34
      %s36 = sshll.u32 [#allocation4], 4
      %s37 = int_to_ptr.vmem [resolvable:$true] %s36
      %42 = dma.hbm_to_vmem [thread:$0]  %s35, 9216, %s37, [#allocation5], 192, 192, 12
    $region17: #{tpu_custom_call.1} parent=1 // pred_fallthru
      _
    // Predicated region
    $region18: #{tpu_custom_call.1} parent=1 // pred_check
      _
    $region19: #{tpu_custom_call.1} parent=1 // pred_check_branch
      %44 = sbr.rel (0) target = $region21
    $region20: #{tpu_custom_call.1} parent=1 // pred_region
      _
    $region21: #{tpu_custom_call.1} parent=1 // pred_fallthru
      _
    // Predicated region
    $region22: #{tpu_custom_call.1} parent=1 // pred_check
      _
    $region23: #{tpu_custom_call.1} parent=1 // pred_check_branch
      %46 = sbr.rel (0) target = $region25
    $region24: #{tpu_custom_call.1} parent=1 // pred_region
      _
    $region25: #{tpu_custom_call.1} parent=1 // pred_fallthru
      _
    // Predicated region
    $region26: #{tpu_custom_call.1} parent=1 // pred_check
      _
    $region27: #{tpu_custom_call.1} parent=1 // pred_check_branch
      %48 = sbr.rel (0) target = $region29
    $region28: #{tpu_custom_call.1} parent=1 // pred_region
      %50 = dma.done [#allocation3], 9216
    $region29: #{tpu_custom_call.1} parent=1 // pred_fallthru
      _
    // Predicated region
    $region30: #{tpu_custom_call.1} parent=1 // pred_check
      _
    $region31: #{tpu_custom_call.1} parent=1 // pred_check_branch
      %52 = sbr.rel (0) target = $region33
    $region32: #{tpu_custom_call.1} parent=1 // pred_region
      %54 = dma.done [#allocation5], 9216
    $region33: #{tpu_custom_call.1} parent=1 // pred_fallthru
      _
    %v56 = vld [vmem:[%s0] sm:$0xff]
    %v57 = vpack.c.bf16 %v56, %v56
    %v58 = vld [vmem:[%s5] sm:$0xff]
    %v59 = vld [vmem:[%s5 + $0x8] sm:$0xf]
    %v60 = vld [vmem:[%s1] sm:$0xff]
    %v61 = vld [vmem:[%s1 + $0x8] sm:$0xf]
    %v62 = vld [vmem:[%s1 + $0xc] sm:$0xff]
    %v63 = vld [vmem:[%s1 + $0x14] sm:$0xf]
    %v64 = vld [vmem:[%s1 + $0x18] sm:$0xff]
    %v65 = vld [vmem:[%s1 + $0x20] sm:$0xf]
    %v66 = vld [vmem:[%s1 + $0x24] sm:$0xff]
    %v67 = vld [vmem:[%s1 + $0x2c] sm:$0xf]
    %v68 = vld [vmem:[%s1 + $0x30] sm:$0xff]
    %v69 = vld [vmem:[%s1 + $0x38] sm:$0xf]
    %v70 = vld [vmem:[%s1 + $0x3c] sm:$0xff]
    %v71 = vld [vmem:[%s1 + $0x44] sm:$0xf]
    %v72 = vld [vmem:[%s1 + $0x48] sm:$0xff]
    %v73 = vld [vmem:[%s1 + $0x50] sm:$0xf]
    %v74 = vld [vmem:[%s1 + $0x54] sm:$0xff]
    %v75 = vld [vmem:[%s1 + $0x5c] sm:$0xf]
    %v78 = vperm.slane %v58, 0
    %v79 = vperm.slane %v58, 4
    %v80 = vperm.slane %v59, 0
    %v84 = vperm.slane %v78, 0
    %v85 = vperm.slane %v79, 0
    %v86 = vperm.slane %v80, 0
    %v103 = vunpack.c.l.b16 %v60
    %v104 = vunpack.c.h.b16 %v60
    %v105 = vunpack.c.l.b16 %v61
    %v106 = vunpack.c.l.b16 %v62
    %v107 = vunpack.c.h.b16 %v62
    %v108 = vunpack.c.l.b16 %v63
    %v109 = vunpack.c.l.b16 %v64
    %v110 = vunpack.c.h.b16 %v64
    %v111 = vunpack.c.l.b16 %v65
    %v112 = vunpack.c.l.b16 %v66
    %v113 = vunpack.c.h.b16 %v66
    %v114 = vunpack.c.l.b16 %v67
    %v115 = vunpack.c.l.b16 %v68
    %v116 = vunpack.c.h.b16 %v68
    %v117 = vunpack.c.l.b16 %v69
    %v118 = vunpack.c.l.b16 %v70
    %v119 = vunpack.c.h.b16 %v70
    %v120 = vunpack.c.l.b16 %v71
    %v121 = vunpack.c.l.b16 %v72
    %v122 = vunpack.c.h.b16 %v72
    %v123 = vunpack.c.l.b16 %v73
    %v124 = vunpack.c.l.b16 %v74
    %v125 = vunpack.c.h.b16 %v74
    %v126 = vunpack.c.l.b16 %v75
    %v127 = vpack.c.b16 %v106, %v103
    %v128 = vpack.c.b16 %v107, %v104
    %v129 = vpack.c.b16 %v108, %v105
    %v130 = vpack.c.b16 %v112, %v109
    %v131 = vpack.c.b16 %v113, %v110
    %v132 = vpack.c.b16 %v114, %v111
    %v133 = vpack.c.b16 %v118, %v115
    %v134 = vpack.c.b16 %v119, %v116
    %v135 = vpack.c.b16 %v120, %v117
    %v136 = vpack.c.b16 %v124, %v121
    %v137 = vpack.c.b16 %v125, %v122
    %v138 = vpack.c.b16 %v126, %v123
    %vm151 = vcmask 523264
    %v153 = vsel %vm151, %v57, 0
    %155 = vmatpush.bf16.msra.mxu0 0
    %156 = vmatpush.bf16.msra.mxu0 0
    %157 = vmatpush.bf16.msra.mxu0 0
    %158 = vmatpush.bf16.msra.mxu0 0
    %159 = vmatpush.bf16.msra.mxu0 %v136
    %160 = vmatpush.bf16.msra.mxu0 %v133
    %161 = vmatpush.bf16.msra.mxu0 %v130
    %162 = vmatpush.bf16.msra.mxu0 %v127
    %163 = vmatmul.bf16.gmra.mxu0 %v153
    %v164 = vpop.f32.mrf.mxu0
    %v165 = vadd.f32 %v84, %v164
    %v166 = vpop.f32.mrf.mxu0
    %167 = vdwg.mxu0
    %168 = vmatpush.bf16.msra.mxu0 0
    %169 = vmatpush.bf16.msra.mxu0 0
    %170 = vmatpush.bf16.msra.mxu0 0
    %171 = vmatpush.bf16.msra.mxu0 0
    %172 = vmatpush.bf16.msra.mxu0 %v137
    %173 = vmatpush.bf16.msra.mxu0 %v134
    %174 = vmatpush.bf16.msra.mxu0 %v131
    %175 = vmatpush.bf16.msra.mxu0 %v128
    %176 = vmatmul.bf16.gmra.mxu0 %v153
    %v177 = vpop.f32.mrf.mxu0
    %v178 = vadd.f32 %v85, %v177
    %v179 = vpop.f32.mrf.mxu0
    %180 = vdwg.mxu0
    %181 = vmatpush.bf16.msra.mxu0 0
    %182 = vmatpush.bf16.msra.mxu0 0
    %183 = vmatpush.bf16.msra.mxu0 0
    %184 = vmatpush.bf16.msra.mxu0 0
    %185 = vmatpush.bf16.msra.mxu0 %v138
    %186 = vmatpush.bf16.msra.mxu0 %v135
    %187 = vmatpush.bf16.msra.mxu0 %v132
    %188 = vmatpush.bf16.msra.mxu0 %v129
    %189 = vmatmul.bf16.gmra.mxu0 %v153
    %v190 = vpop.f32.mrf.mxu0
    %v191 = vadd.f32 %v86, %v190
    %v192 = vpop.f32.mrf.mxu0
    %193 = vdwg.mxu0
    %v194 = vmax.f32 %v165, 0.0
    %v195 = vmax.f32 %v178, 0.0
    %v196 = vmax.f32 %v191, 0.0
    %v197 = vpack.c.bf16 %v194, %v194
    %v198 = vpack.c.bf16 %v195, %v195
    %v199 = vpack.c.bf16 %v196, %v196
    %v200 = vld [vmem:[#allocation2] sm:$0xff]
    %v201 = vld [vmem:[#allocation2 + $0x8] sm:$0xf]
    %v202 = vld [vmem:[#allocation2 + $0xc] sm:$0xff]
    %v203 = vld [vmem:[#allocation2 + $0x14] sm:$0xf]
    %v204 = vld [vmem:[#allocation2 + $0x18] sm:$0xff]
    %v205 = vld [vmem:[#allocation2 + $0x20] sm:$0xf]
    %v206 = vld [vmem:[#allocation2 + $0x24] sm:$0xff]
    %v207 = vld [vmem:[#allocation2 + $0x2c] sm:$0xf]
    %v208 = vld [vmem:[#allocation2 + $0x30] sm:$0xff]
    %v209 = vld [vmem:[#allocation2 + $0x38] sm:$0xf]
    %v210 = vld [vmem:[#allocation2 + $0x3c] sm:$0xff]
    %v211 = vld [vmem:[#allocation2 + $0x44] sm:$0xf]
    %v212 = vld [vmem:[#allocation2 + $0x48] sm:$0xff]
    %v213 = vld [vmem:[#allocation2 + $0x50] sm:$0xf]
    %v214 = vld [vmem:[#allocation2 + $0x54] sm:$0xff]
    %v215 = vld [vmem:[#allocation2 + $0x5c] sm:$0xf]
    %v216 = vld [vmem:[#allocation2 + $0x60] sm:$0xff]
    %v217 = vld [vmem:[#allocation2 + $0x68] sm:$0xf]
    %v218 = vld [vmem:[#allocation2 + $0x6c] sm:$0xff]
    %v219 = vld [vmem:[#allocation2 + $0x74] sm:$0xf]
    %v220 = vld [vmem:[#allocation2 + $0x78] sm:$0xff]
    %v221 = vld [vmem:[#allocation2 + $0x80] sm:$0xf]
    %v222 = vld [vmem:[#allocation2 + $0x84] sm:$0xff]
    %v223 = vld [vmem:[#allocation2 + $0x8c] sm:$0xf]
    %v224 = vld [vmem:[#allocation2 + $0x90] sm:$0xff]
    %v225 = vld [vmem:[#allocation2 + $0x98] sm:$0xf]
    %v226 = vld [vmem:[#allocation2 + $0x9c] sm:$0xff]
    %v227 = vld [vmem:[#allocation2 + $0xa4] sm:$0xf]
    %v228 = vld [vmem:[#allocation2 + $0xa8] sm:$0xff]
    %v229 = vld [vmem:[#allocation2 + $0xb0] sm:$0xf]
    %v230 = vld [vmem:[#allocation2 + $0xb4] sm:$0xff]
    %v231 = vld [vmem:[#allocation2 + $0xbc] sm:$0xf]
    %v232 = vld [vmem:[#allocation2 + $0xc0] sm:$0xff]
    %v233 = vld [vmem:[#allocation2 + $0xc8] sm:$0xf]
    %v234 = vld [vmem:[#allocation2 + $0xcc] sm:$0xff]
    %v235 = vld [vmem:[#allocation2 + $0xd4] sm:$0xf]
    %v236 = vld [vmem:[#allocation2 + $0xd8] sm:$0xff]
    %v237 = vld [vmem:[#allocation2 + $0xe0] sm:$0xf]
    %v238 = vld [vmem:[#allocation2 + $0xe4] sm:$0xff]
    %v239 = vld [vmem:[#allocation2 + $0xec] sm:$0xf]
    %v240 = vld [vmem:[#allocation2 + $0xf0] sm:$0xff]
    %v241 = vld [vmem:[#allocation2 + $0xf8] sm:$0xf]
    %v242 = vld [vmem:[#allocation2 + $0xfc] sm:$0xff]
    %v243 = vld [vmem:[#allocation2 + $0x104] sm:$0xf]
    %v244 = vld [vmem:[#allocation2 + $0x108] sm:$0xff]
    %v245 = vld [vmem:[#allocation2 + $0x110] sm:$0xf]
    %v246 = vld [vmem:[#allocation2 + $0x114] sm:$0xff]
    %v247 = vld [vmem:[#allocation2 + $0x11c] sm:$0xf]
    %v248 = vld [vmem:[#allocation2 + $0x120] sm:$0xff]
    %v249 = vld [vmem:[#allocation2 + $0x128] sm:$0xf]
    %v250 = vld [vmem:[#allocation2 + $0x12c] sm:$0xff]
    %v251 = vld [vmem:[#allocation2 + $0x134] sm:$0xf]
    %v252 = vld [vmem:[#allocation2 + $0x138] sm:$0xff]
    %v253 = vld [vmem:[#allocation2 + $0x140] sm:$0xf]
    %v254 = vld [vmem:[#allocation2 + $0x144] sm:$0xff]
    %v255 = vld [vmem:[#allocation2 + $0x14c] sm:$0xf]
    %v256 = vld [vmem:[#allocation2 + $0x150] sm:$0xff]
    %v257 = vld [vmem:[#allocation2 + $0x158] sm:$0xf]
    %v258 = vld [vmem:[#allocation2 + $0x15c] sm:$0xff]
    %v259 = vld [vmem:[#allocation2 + $0x164] sm:$0xf]
    %v260 = vld [vmem:[#allocation2 + $0x168] sm:$0xff]
    %v261 = vld [vmem:[#allocation2 + $0x170] sm:$0xf]
    %v262 = vld [vmem:[#allocation2 + $0x174] sm:$0xff]
    %v263 = vld [vmem:[#allocation2 + $0x17c] sm:$0xf]
    %v264 = vld [vmem:[#allocation2 + $0x180] sm:$0xff]
    %v265 = vld [vmem:[#allocation2 + $0x188] sm:$0xf]
    %v266 = vld [vmem:[#allocation2 + $0x18c] sm:$0xff]
    %v267 = vld [vmem:[#allocation2 + $0x194] sm:$0xf]
    %v268 = vld [vmem:[#allocation2 + $0x198] sm:$0xff]
    %v269 = vld [vmem:[#allocation2 + $0x1a0] sm:$0xf]
    %v270 = vld [vmem:[#allocation2 + $0x1a4] sm:$0xff]
    %v271 = vld [vmem:[#allocation2 + $0x1ac] sm:$0xf]
    %v272 = vld [vmem:[#allocation2 + $0x1b0] sm:$0xff]
    %v273 = vld [vmem:[#allocation2 + $0x1b8] sm:$0xf]
    %v274 = vld [vmem:[#allocation2 + $0x1bc] sm:$0xff]
    %v275 = vld [vmem:[#allocation2 + $0x1c4] sm:$0xf]
    %v276 = vld [vmem:[#allocation2 + $0x1c8] sm:$0xff]
    %v277 = vld [vmem:[#allocation2 + $0x1d0] sm:$0xf]
    %v278 = vld [vmem:[#allocation2 + $0x1d4] sm:$0xff]
    %v279 = vld [vmem:[#allocation2 + $0x1dc] sm:$0xf]
    %v280 = vld [vmem:[#allocation2 + $0x1e0] sm:$0xff]
    %v281 = vld [vmem:[#allocation2 + $0x1e8] sm:$0xf]
    %v282 = vld [vmem:[#allocation2 + $0x1ec] sm:$0xff]
    %v283 = vld [vmem:[#allocation2 + $0x1f4] sm:$0xf]
    %v284 = vld [vmem:[#allocation2 + $0x1f8] sm:$0xff]
    %v285 = vld [vmem:[#allocation2 + $0x200] sm:$0xf]
    %v286 = vld [vmem:[#allocation2 + $0x204] sm:$0xff]
    %v287 = vld [vmem:[#allocation2 + $0x20c] sm:$0xf]
    %v288 = vld [vmem:[#allocation2 + $0x210] sm:$0xff]
    %v289 = vld [vmem:[#allocation2 + $0x218] sm:$0xf]
    %v290 = vld [vmem:[#allocation2 + $0x21c] sm:$0xff]
    %v291 = vld [vmem:[#allocation2 + $0x224] sm:$0xf]
    %v292 = vld [vmem:[#allocation2 + $0x228] sm:$0xff]
    %v293 = vld [vmem:[#allocation2 + $0x230] sm:$0xf]
    %v294 = vld [vmem:[#allocation2 + $0x234] sm:$0xff]
    %v295 = vld [vmem:[#allocation2 + $0x23c] sm:$0xf]
    %v296 = vperm.slane %v58, 1
    %v297 = vperm.slane %v58, 5
    %v298 = vperm.slane %v59, 1
    %v302 = vperm.slane %v296, 1
    %v303 = vperm.slane %v297, 1
    %v304 = vperm.slane %v298, 1
    %v401 = vunpack.c.l.b16 %v200
    %v402 = vunpack.c.h.b16 %v200
    %v403 = vunpack.c.l.b16 %v201
    %v404 = vunpack.c.l.b16 %v202
    %v405 = vunpack.c.h.b16 %v202
    %v406 = vunpack.c.l.b16 %v203
    %v407 = vunpack.c.l.b16 %v204
    %v408 = vunpack.c.h.b16 %v204
    %v409 = vunpack.c.l.b16 %v205
    %v410 = vunpack.c.l.b16 %v206
    %v411 = vunpack.c.h.b16 %v206
    %v412 = vunpack.c.l.b16 %v207
    %v413 = vunpack.c.l.b16 %v208
    %v414 = vunpack.c.h.b16 %v208
    %v415 = vunpack.c.l.b16 %v209
    %v416 = vunpack.c.l.b16 %v210
    %v417 = vunpack.c.h.b16 %v210
    %v418 = vunpack.c.l.b16 %v211
    %v419 = vunpack.c.l.b16 %v212
    %v420 = vunpack.c.h.b16 %v212
    %v421 = vunpack.c.l.b16 %v213
    %v422 = vunpack.c.l.b16 %v214
    %v423 = vunpack.c.h.b16 %v214
    %v424 = vunpack.c.l.b16 %v215
    %v425 = vunpack.c.l.b16 %v216
    %v426 = vunpack.c.h.b16 %v216
    %v427 = vunpack.c.l.b16 %v217
    %v428 = vunpack.c.l.b16 %v218
    %v429 = vunpack.c.h.b16 %v218
    %v430 = vunpack.c.l.b16 %v219
    %v431 = vunpack.c.l.b16 %v220
    %v432 = vunpack.c.h.b16 %v220
    %v433 = vunpack.c.l.b16 %v221
    %v434 = vunpack.c.l.b16 %v222
    %v435 = vunpack.c.h.b16 %v222
    %v436 = vunpack.c.l.b16 %v223
    %v437 = vunpack.c.l.b16 %v224
    %v438 = vunpack.c.h.b16 %v224
    %v439 = vunpack.c.l.b16 %v225
    %v440 = vunpack.c.l.b16 %v226
    %v441 = vunpack.c.h.b16 %v226
    %v442 = vunpack.c.l.b16 %v227
    %v443 = vunpack.c.l.b16 %v228
    %v444 = vunpack.c.h.b16 %v228
    %v445 = vunpack.c.l.b16 %v229
    %v446 = vunpack.c.l.b16 %v230
    %v447 = vunpack.c.h.b16 %v230
    %v448 = vunpack.c.l.b16 %v231
    %v449 = vunpack.c.l.b16 %v232
    %v450 = vunpack.c.h.b16 %v232
    %v451 = vunpack.c.l.b16 %v233
    %v452 = vunpack.c.l.b16 %v234
    %v453 = vunpack.c.h.b16 %v234
    %v454 = vunpack.c.l.b16 %v235
    %v455 = vunpack.c.l.b16 %v236
    %v456 = vunpack.c.h.b16 %v236
    %v457 = vunpack.c.l.b16 %v237
    %v458 = vunpack.c.l.b16 %v238
    %v459 = vunpack.c.h.b16 %v238
    %v460 = vunpack.c.l.b16 %v239
    %v461 = vunpack.c.l.b16 %v240
    %v462 = vunpack.c.h.b16 %v240
    %v463 = vunpack.c.l.b16 %v241
    %v464 = vunpack.c.l.b16 %v242
    %v465 = vunpack.c.h.b16 %v242
    %v466 = vunpack.c.l.b16 %v243
    %v467 = vunpack.c.l.b16 %v244
    %v468 = vunpack.c.h.b16 %v244
    %v469 = vunpack.c.l.b16 %v245
    %v470 = vunpack.c.l.b16 %v246
    %v471 = vunpack.c.h.b16 %v246
    %v472 = vunpack.c.l.b16 %v247
    %v473 = vunpack.c.l.b16 %v248
    %v474 = vunpack.c.h.b16 %v248
    %v475 = vunpack.c.l.b16 %v249
    %v476 = vunpack.c.l.b16 %v250
    %v477 = vunpack.c.h.b16 %v250
    %v478 = vunpack.c.l.b16 %v251
    %v479 = vunpack.c.l.b16 %v252
    %v480 = vunpack.c.h.b16 %v252
    %v481 = vunpack.c.l.b16 %v253
    %v482 = vunpack.c.l.b16 %v254
    %v483 = vunpack.c.h.b16 %v254
    %v484 = vunpack.c.l.b16 %v255
    %v485 = vunpack.c.l.b16 %v256
    %v486 = vunpack.c.h.b16 %v256
    %v487 = vunpack.c.l.b16 %v257
    %v488 = vunpack.c.l.b16 %v258
    %v489 = vunpack.c.h.b16 %v258
    %v490 = vunpack.c.l.b16 %v259
    %v491 = vunpack.c.l.b16 %v260
    %v492 = vunpack.c.h.b16 %v260
    %v493 = vunpack.c.l.b16 %v261
    %v494 = vunpack.c.l.b16 %v262
    %v495 = vunpack.c.h.b16 %v262
    %v496 = vunpack.c.l.b16 %v263
    %v497 = vunpack.c.l.b16 %v264
    %v498 = vunpack.c.h.b16 %v264
    %v499 = vunpack.c.l.b16 %v265
    %v500 = vunpack.c.l.b16 %v266
    %v501 = vunpack.c.h.b16 %v266
    %v502 = vunpack.c.l.b16 %v267
    %v503 = vunpack.c.l.b16 %v268
    %v504 = vunpack.c.h.b16 %v268
    %v505 = vunpack.c.l.b16 %v269
    %v506 = vunpack.c.l.b16 %v270
    %v507 = vunpack.c.h.b16 %v270
    %v508 = vunpack.c.l.b16 %v271
    %v509 = vunpack.c.l.b16 %v272
    %v510 = vunpack.c.h.b16 %v272
    %v511 = vunpack.c.l.b16 %v273
    %v512 = vunpack.c.l.b16 %v274
    %v513 = vunpack.c.h.b16 %v274
    %v514 = vunpack.c.l.b16 %v275
    %v515 = vunpack.c.l.b16 %v276
    %v516 = vunpack.c.h.b16 %v276
    %v517 = vunpack.c.l.b16 %v277
    %v518 = vunpack.c.l.b16 %v278
    %v519 = vunpack.c.h.b16 %v278
    %v520 = vunpack.c.l.b16 %v279
    %v521 = vunpack.c.l.b16 %v280
    %v522 = vunpack.c.h.b16 %v280
    %v523 = vunpack.c.l.b16 %v281
    %v524 = vunpack.c.l.b16 %v282
    %v525 = vunpack.c.h.b16 %v282
    %v526 = vunpack.c.l.b16 %v283
    %v527 = vunpack.c.l.b16 %v284
    %v528 = vunpack.c.h.b16 %v284
    %v529 = vunpack.c.l.b16 %v285
    %v530 = vunpack.c.l.b16 %v286
    %v531 = vunpack.c.h.b16 %v286
    %v532 = vunpack.c.l.b16 %v287
    %v533 = vunpack.c.l.b16 %v288
    %v534 = vunpack.c.h.b16 %v288
    %v535 = vunpack.c.l.b16 %v289
    %v536 = vunpack.c.l.b16 %v290
    %v537 = vunpack.c.h.b16 %v290
    %v538 = vunpack.c.l.b16 %v291
    %v539 = vunpack.c.l.b16 %v292
    %v540 = vunpack.c.h.b16 %v292
    %v541 = vunpack.c.l.b16 %v293
    %v542 = vunpack.c.l.b16 %v294
    %v543 = vunpack.c.h.b16 %v294
    %v544 = vunpack.c.l.b16 %v295
    %v545 = vpack.c.b16 %v404, %v401
    %v546 = vpack.c.b16 %v405, %v402
    %v547 = vpack.c.b16 %v406, %v403
    %v548 = vpack.c.b16 %v410, %v407
    %v549 = vpack.c.b16 %v411, %v408
    %v550 = vpack.c.b16 %v412, %v409
    %v551 = vpack.c.b16 %v416, %v413
    %v552 = vpack.c.b16 %v417, %v414
    %v553 = vpack.c.b16 %v418, %v415
    %v554 = vpack.c.b16 %v422, %v419
    %v555 = vpack.c.b16 %v423, %v420
    %v556 = vpack.c.b16 %v424, %v421
    %v557 = vpack.c.b16 %v428, %v425
    %v558 = vpack.c.b16 %v429, %v426
    %v559 = vpack.c.b16 %v430, %v427
    %v560 = vpack.c.b16 %v434, %v431
    %v561 = vpack.c.b16 %v435, %v432
    %v562 = vpack.c.b16 %v436, %v433
    %v563 = vpack.c.b16 %v440, %v437
    %v564 = vpack.c.b16 %v441, %v438
    %v565 = vpack.c.b16 %v442, %v439
    %v566 = vpack.c.b16 %v446, %v443
    %v567 = vpack.c.b16 %v447, %v444
    %v568 = vpack.c.b16 %v448, %v445
    %v569 = vpack.c.b16 %v452, %v449
    %v570 = vpack.c.b16 %v453, %v450
    %v571 = vpack.c.b16 %v454, %v451
    %v572 = vpack.c.b16 %v458, %v455
    %v573 = vpack.c.b16 %v459, %v456
    %v574 = vpack.c.b16 %v460, %v457
    %v575 = vpack.c.b16 %v464, %v461
    %v576 = vpack.c.b16 %v465, %v462
    %v577 = vpack.c.b16 %v466, %v463
    %v578 = vpack.c.b16 %v470, %v467
    %v579 = vpack.c.b16 %v471, %v468
    %v580 = vpack.c.b16 %v472, %v469
    %v581 = vpack.c.b16 %v476, %v473
    %v582 = vpack.c.b16 %v477, %v474
    %v583 = vpack.c.b16 %v478, %v475
    %v584 = vpack.c.b16 %v482, %v479
    %v585 = vpack.c.b16 %v483, %v480
    %v586 = vpack.c.b16 %v484, %v481
    %v587 = vpack.c.b16 %v488, %v485
    %v588 = vpack.c.b16 %v489, %v486
    %v589 = vpack.c.b16 %v490, %v487
    %v590 = vpack.c.b16 %v494, %v491
    %v591 = vpack.c.b16 %v495, %v492
    %v592 = vpack.c.b16 %v496, %v493
    %v593 = vpack.c.b16 %v500, %v497
    %v594 = vpack.c.b16 %v501, %v498
    %v595 = vpack.c.b16 %v502, %v499
    %v596 = vpack.c.b16 %v506, %v503
    %v597 = vpack.c.b16 %v507, %v504
    %v598 = vpack.c.b16 %v508, %v505
    %v599 = vpack.c.b16 %v512, %v509
    %v600 = vpack.c.b16 %v513, %v510
    %v601 = vpack.c.b16 %v514, %v511
    %v602 = vpack.c.b16 %v518, %v515
    %v603 = vpack.c.b16 %v519, %v516
    %v604 = vpack.c.b16 %v520, %v517
    %v605 = vpack.c.b16 %v524, %v521
    %v606 = vpack.c.b16 %v525, %v522
    %v607 = vpack.c.b16 %v526, %v523
    %v608 = vpack.c.b16 %v530, %v527
    %v609 = vpack.c.b16 %v531, %v528
    %v610 = vpack.c.b16 %v532, %v529
    %v611 = vpack.c.b16 %v536, %v533
    %v612 = vpack.c.b16 %v537, %v534
    %v613 = vpack.c.b16 %v538, %v535
    %v614 = vpack.c.b16 %v542, %v539
    %v615 = vpack.c.b16 %v543, %v540
    %v616 = vpack.c.b16 %v544, %v541
    %689 = vmatpush.bf16.msra.mxu0 %v566
    %690 = vmatpush.bf16.msra.mxu0 %v563
    %691 = vmatpush.bf16.msra.mxu0 %v560
    %692 = vmatpush.bf16.msra.mxu0 %v557
    %693 = vmatpush.bf16.msra.mxu0 %v554
    %694 = vmatpush.bf16.msra.mxu0 %v551
    %695 = vmatpush.bf16.msra.mxu0 %v548
    %696 = vmatpush.bf16.msra.mxu0 %v545
    %697 = vmatmul.bf16.gmra.mxu0 %v197
    %v698 = vpop.f32.mrf.mxu0
    %v699 = vadd.f32 %v302, %v698
    %v700 = vpop.f32.mrf.mxu0
    %701 = vdwg.mxu0
    %702 = vmatpush.bf16.msra.mxu0 %v590
    %703 = vmatpush.bf16.msra.mxu0 %v587
    %704 = vmatpush.bf16.msra.mxu0 %v584
    %705 = vmatpush.bf16.msra.mxu0 %v581
    %706 = vmatpush.bf16.msra.mxu0 %v578
    %707 = vmatpush.bf16.msra.mxu0 %v575
    %708 = vmatpush.bf16.msra.mxu0 %v572
    %709 = vmatpush.bf16.msra.mxu0 %v569
    %710 = vmatmul.bf16.gmra.mxu0 %v198
    %v711 = vpop.f32.mrf.mxu0
    %v712 = vadd.f32 %v699, %v711
    %v713 = vpop.f32.mrf.mxu0
    %714 = vdwg.mxu0
    %715 = vmatpush.bf16.msra.mxu0 %v614
    %716 = vmatpush.bf16.msra.mxu0 %v611
    %717 = vmatpush.bf16.msra.mxu0 %v608
    %718 = vmatpush.bf16.msra.mxu0 %v605
    %719 = vmatpush.bf16.msra.mxu0 %v602
    %720 = vmatpush.bf16.msra.mxu0 %v599
    %721 = vmatpush.bf16.msra.mxu0 %v596
    %722 = vmatpush.bf16.msra.mxu0 %v593
    %723 = vmatmul.bf16.gmra.mxu0 %v199
    %v724 = vpop.f32.mrf.mxu0
    %v725 = vadd.f32 %v712, %v724
    %v726 = vpop.f32.mrf.mxu0
    %727 = vdwg.mxu0
    %728 = vmatpush.bf16.msra.mxu0 %v567
    %729 = vmatpush.bf16.msra.mxu0 %v564
    %730 = vmatpush.bf16.msra.mxu0 %v561
    %731 = vmatpush.bf16.msra.mxu0 %v558
    %732 = vmatpush.bf16.msra.mxu0 %v555
    %733 = vmatpush.bf16.msra.mxu0 %v552
    %734 = vmatpush.bf16.msra.mxu0 %v549
    %735 = vmatpush.bf16.msra.mxu0 %v546
    %736 = vmatmul.bf16.gmra.mxu0 %v197
    %v737 = vpop.f32.mrf.mxu0
    %v738 = vadd.f32 %v303, %v737
    %v739 = vpop.f32.mrf.mxu0
    %740 = vdwg.mxu0
    %741 = vmatpush.bf16.msra.mxu0 %v591
    %742 = vmatpush.bf16.msra.mxu0 %v588
    %743 = vmatpush.bf16.msra.mxu0 %v585
    %744 = vmatpush.bf16.msra.mxu0 %v582
    %745 = vmatpush.bf16.msra.mxu0 %v579
    %746 = vmatpush.bf16.msra.mxu0 %v576
    %747 = vmatpush.bf16.msra.mxu0 %v573
    %748 = vmatpush.bf16.msra.mxu0 %v570
    %749 = vmatmul.bf16.gmra.mxu0 %v198
    %v750 = vpop.f32.mrf.mxu0
    %v751 = vadd.f32 %v738, %v750
    %v752 = vpop.f32.mrf.mxu0
    %753 = vdwg.mxu0
    %754 = vmatpush.bf16.msra.mxu0 %v615
    %755 = vmatpush.bf16.msra.mxu0 %v612
    %756 = vmatpush.bf16.msra.mxu0 %v609
    %757 = vmatpush.bf16.msra.mxu0 %v606
    %758 = vmatpush.bf16.msra.mxu0 %v603
    %759 = vmatpush.bf16.msra.mxu0 %v600
    %760 = vmatpush.bf16.msra.mxu0 %v597
    %761 = vmatpush.bf16.msra.mxu0 %v594
    %762 = vmatmul.bf16.gmra.mxu0 %v199
    %v763 = vpop.f32.mrf.mxu0
    %v764 = vadd.f32 %v751, %v763
    %v765 = vpop.f32.mrf.mxu0
    %766 = vdwg.mxu0
    %767 = vmatpush.bf16.msra.mxu0 %v568
    %768 = vmatpush.bf16.msra.mxu0 %v565
    %769 = vmatpush.bf16.msra.mxu0 %v562
    %770 = vmatpush.bf16.msra.mxu0 %v559
    %771 = vmatpush.bf16.msra.mxu0 %v556
    %772 = vmatpush.bf16.msra.mxu0 %v553
    %773 = vmatpush.bf16.msra.mxu0 %v550
    %774 = vmatpush.bf16.msra.mxu0 %v547
    %775 = vmatmul.bf16.gmra.mxu0 %v197
    %v776 = vpop.f32.mrf.mxu0
    %v777 = vadd.f32 %v304, %v776
    %v778 = vpop.f32.mrf.mxu0
    %779 = vdwg.mxu0
    %780 = vmatpush.bf16.msra.mxu0 %v592
    %781 = vmatpush.bf16.msra.mxu0 %v589
    %782 = vmatpush.bf16.msra.mxu0 %v586
    %783 = vmatpush.bf16.msra.mxu0 %v583
    %784 = vmatpush.bf16.msra.mxu0 %v580
    %785 = vmatpush.bf16.msra.mxu0 %v577
    %786 = vmatpush.bf16.msra.mxu0 %v574
    %787 = vmatpush.bf16.msra.mxu0 %v571
    %788 = vmatmul.bf16.gmra.mxu0 %v198
    %v789 = vpop.f32.mrf.mxu0
    %v790 = vadd.f32 %v777, %v789
    %v791 = vpop.f32.mrf.mxu0
    %792 = vdwg.mxu0
    %793 = vmatpush.bf16.msra.mxu0 %v616
    %794 = vmatpush.bf16.msra.mxu0 %v613
    %795 = vmatpush.bf16.msra.mxu0 %v610
    %796 = vmatpush.bf16.msra.mxu0 %v607
    %797 = vmatpush.bf16.msra.mxu0 %v604
    %798 = vmatpush.bf16.msra.mxu0 %v601
    %799 = vmatpush.bf16.msra.mxu0 %v598
    %800 = vmatpush.bf16.msra.mxu0 %v595
    %801 = vmatmul.bf16.gmra.mxu0 %v199
    %v802 = vpop.f32.mrf.mxu0
    %v803 = vadd.f32 %v790, %v802
    %v804 = vpop.f32.mrf.mxu0
    %805 = vdwg.mxu0
    %v806 = vmax.f32 %v725, 0.0
    %v807 = vmax.f32 %v764, 0.0
    %v808 = vmax.f32 %v803, 0.0
    %v809 = vpack.c.bf16 %v806, %v806
    %v810 = vpack.c.bf16 %v807, %v807
    %v811 = vpack.c.bf16 %v808, %v808
    %v812 = vld [vmem:[#allocation4] sm:$0xff]
    %v813 = vld [vmem:[#allocation4 + $0x8] sm:$0xf]
    %v814 = vld [vmem:[#allocation4 + $0xc] sm:$0xff]
    %v815 = vld [vmem:[#allocation4 + $0x14] sm:$0xf]
    %v816 = vld [vmem:[#allocation4 + $0x18] sm:$0xff]
    %v817 = vld [vmem:[#allocation4 + $0x20] sm:$0xf]
    %v818 = vld [vmem:[#allocation4 + $0x24] sm:$0xff]
    %v819 = vld [vmem:[#allocation4 + $0x2c] sm:$0xf]
    %v820 = vld [vmem:[#allocation4 + $0x30] sm:$0xff]
    %v821 = vld [vmem:[#allocation4 + $0x38] sm:$0xf]
    %v822 = vld [vmem:[#allocation4 + $0x3c] sm:$0xff]
    %v823 = vld [vmem:[#allocation4 + $0x44] sm:$0xf]
    %v824 = vld [vmem:[#allocation4 + $0x48] sm:$0xff]
    %v825 = vld [vmem:[#allocation4 + $0x50] sm:$0xf]
    %v826 = vld [vmem:[#allocation4 + $0x54] sm:$0xff]
    %v827 = vld [vmem:[#allocation4 + $0x5c] sm:$0xf]
    %v828 = vld [vmem:[#allocation4 + $0x60] sm:$0xff]
    %v829 = vld [vmem:[#allocation4 + $0x68] sm:$0xf]
    %v830 = vld [vmem:[#allocation4 + $0x6c] sm:$0xff]
    %v831 = vld [vmem:[#allocation4 + $0x74] sm:$0xf]
    %v832 = vld [vmem:[#allocation4 + $0x78] sm:$0xff]
    %v833 = vld [vmem:[#allocation4 + $0x80] sm:$0xf]
    %v834 = vld [vmem:[#allocation4 + $0x84] sm:$0xff]
    %v835 = vld [vmem:[#allocation4 + $0x8c] sm:$0xf]
    %v836 = vld [vmem:[#allocation4 + $0x90] sm:$0xff]
    %v837 = vld [vmem:[#allocation4 + $0x98] sm:$0xf]
    %v838 = vld [vmem:[#allocation4 + $0x9c] sm:$0xff]
    %v839 = vld [vmem:[#allocation4 + $0xa4] sm:$0xf]
    %v840 = vld [vmem:[#allocation4 + $0xa8] sm:$0xff]
    %v841 = vld [vmem:[#allocation4 + $0xb0] sm:$0xf]
    %v842 = vld [vmem:[#allocation4 + $0xb4] sm:$0xff]
    %v843 = vld [vmem:[#allocation4 + $0xbc] sm:$0xf]
    %v844 = vld [vmem:[#allocation4 + $0xc0] sm:$0xff]
    %v845 = vld [vmem:[#allocation4 + $0xc8] sm:$0xf]
    %v846 = vld [vmem:[#allocation4 + $0xcc] sm:$0xff]
    %v847 = vld [vmem:[#allocation4 + $0xd4] sm:$0xf]
    %v848 = vld [vmem:[#allocation4 + $0xd8] sm:$0xff]
    %v849 = vld [vmem:[#allocation4 + $0xe0] sm:$0xf]
    %v850 = vld [vmem:[#allocation4 + $0xe4] sm:$0xff]
    %v851 = vld [vmem:[#allocation4 + $0xec] sm:$0xf]
    %v852 = vld [vmem:[#allocation4 + $0xf0] sm:$0xff]
    %v853 = vld [vmem:[#allocation4 + $0xf8] sm:$0xf]
    %v854 = vld [vmem:[#allocation4 + $0xfc] sm:$0xff]
    %v855 = vld [vmem:[#allocation4 + $0x104] sm:$0xf]
    %v856 = vld [vmem:[#allocation4 + $0x108] sm:$0xff]
    %v857 = vld [vmem:[#allocation4 + $0x110] sm:$0xf]
    %v858 = vld [vmem:[#allocation4 + $0x114] sm:$0xff]
    %v859 = vld [vmem:[#allocation4 + $0x11c] sm:$0xf]
    %v860 = vld [vmem:[#allocation4 + $0x120] sm:$0xff]
    %v861 = vld [vmem:[#allocation4 + $0x128] sm:$0xf]
    %v862 = vld [vmem:[#allocation4 + $0x12c] sm:$0xff]
    %v863 = vld [vmem:[#allocation4 + $0x134] sm:$0xf]
    %v864 = vld [vmem:[#allocation4 + $0x138] sm:$0xff]
    %v865 = vld [vmem:[#allocation4 + $0x140] sm:$0xf]
    %v866 = vld [vmem:[#allocation4 + $0x144] sm:$0xff]
    %v867 = vld [vmem:[#allocation4 + $0x14c] sm:$0xf]
    %v868 = vld [vmem:[#allocation4 + $0x150] sm:$0xff]
    %v869 = vld [vmem:[#allocation4 + $0x158] sm:$0xf]
    %v870 = vld [vmem:[#allocation4 + $0x15c] sm:$0xff]
    %v871 = vld [vmem:[#allocation4 + $0x164] sm:$0xf]
    %v872 = vld [vmem:[#allocation4 + $0x168] sm:$0xff]
    %v873 = vld [vmem:[#allocation4 + $0x170] sm:$0xf]
    %v874 = vld [vmem:[#allocation4 + $0x174] sm:$0xff]
    %v875 = vld [vmem:[#allocation4 + $0x17c] sm:$0xf]
    %v876 = vld [vmem:[#allocation4 + $0x180] sm:$0xff]
    %v877 = vld [vmem:[#allocation4 + $0x188] sm:$0xf]
    %v878 = vld [vmem:[#allocation4 + $0x18c] sm:$0xff]
    %v879 = vld [vmem:[#allocation4 + $0x194] sm:$0xf]
    %v880 = vld [vmem:[#allocation4 + $0x198] sm:$0xff]
    %v881 = vld [vmem:[#allocation4 + $0x1a0] sm:$0xf]
    %v882 = vld [vmem:[#allocation4 + $0x1a4] sm:$0xff]
    %v883 = vld [vmem:[#allocation4 + $0x1ac] sm:$0xf]
    %v884 = vld [vmem:[#allocation4 + $0x1b0] sm:$0xff]
    %v885 = vld [vmem:[#allocation4 + $0x1b8] sm:$0xf]
    %v886 = vld [vmem:[#allocation4 + $0x1bc] sm:$0xff]
    %v887 = vld [vmem:[#allocation4 + $0x1c4] sm:$0xf]
    %v888 = vld [vmem:[#allocation4 + $0x1c8] sm:$0xff]
    %v889 = vld [vmem:[#allocation4 + $0x1d0] sm:$0xf]
    %v890 = vld [vmem:[#allocation4 + $0x1d4] sm:$0xff]
    %v891 = vld [vmem:[#allocation4 + $0x1dc] sm:$0xf]
    %v892 = vld [vmem:[#allocation4 + $0x1e0] sm:$0xff]
    %v893 = vld [vmem:[#allocation4 + $0x1e8] sm:$0xf]
    %v894 = vld [vmem:[#allocation4 + $0x1ec] sm:$0xff]
    %v895 = vld [vmem:[#allocation4 + $0x1f4] sm:$0xf]
    %v896 = vld [vmem:[#allocation4 + $0x1f8] sm:$0xff]
    %v897 = vld [vmem:[#allocation4 + $0x200] sm:$0xf]
    %v898 = vld [vmem:[#allocation4 + $0x204] sm:$0xff]
    %v899 = vld [vmem:[#allocation4 + $0x20c] sm:$0xf]
    %v900 = vld [vmem:[#allocation4 + $0x210] sm:$0xff]
    %v901 = vld [vmem:[#allocation4 + $0x218] sm:$0xf]
    %v902 = vld [vmem:[#allocation4 + $0x21c] sm:$0xff]
    %v903 = vld [vmem:[#allocation4 + $0x224] sm:$0xf]
    %v904 = vld [vmem:[#allocation4 + $0x228] sm:$0xff]
    %v905 = vld [vmem:[#allocation4 + $0x230] sm:$0xf]
    %v906 = vld [vmem:[#allocation4 + $0x234] sm:$0xff]
    %v907 = vld [vmem:[#allocation4 + $0x23c] sm:$0xf]
    %v908 = vperm.slane %v58, 2
    %v909 = vperm.slane %v58, 6
    %v910 = vperm.slane %v59, 2
    %v914 = vperm.slane %v908, 2
    %v915 = vperm.slane %v909, 2
    %v916 = vperm.slane %v910, 2
    %v1013 = vunpack.c.l.b16 %v812
    %v1014 = vunpack.c.h.b16 %v812
    %v1015 = vunpack.c.l.b16 %v813
    %v1016 = vunpack.c.l.b16 %v814
    %v1017 = vunpack.c.h.b16 %v814
    %v1018 = vunpack.c.l.b16 %v815
    %v1019 = vunpack.c.l.b16 %v816
    %v1020 = vunpack.c.h.b16 %v816
    %v1021 = vunpack.c.l.b16 %v817
    %v1022 = vunpack.c.l.b16 %v818
    %v1023 = vunpack.c.h.b16 %v818
    %v1024 = vunpack.c.l.b16 %v819
    %v1025 = vunpack.c.l.b16 %v820
    %v1026 = vunpack.c.h.b16 %v820
    %v1027 = vunpack.c.l.b16 %v821
    %v1028 = vunpack.c.l.b16 %v822
    %v1029 = vunpack.c.h.b16 %v822
    %v1030 = vunpack.c.l.b16 %v823
    %v1031 = vunpack.c.l.b16 %v824
    %v1032 = vunpack.c.h.b16 %v824
    %v1033 = vunpack.c.l.b16 %v825
    %v1034 = vunpack.c.l.b16 %v826
    %v1035 = vunpack.c.h.b16 %v826
    %v1036 = vunpack.c.l.b16 %v827
    %v1037 = vunpack.c.l.b16 %v828
    %v1038 = vunpack.c.h.b16 %v828
    %v1039 = vunpack.c.l.b16 %v829
    %v1040 = vunpack.c.l.b16 %v830
    %v1041 = vunpack.c.h.b16 %v830
    %v1042 = vunpack.c.l.b16 %v831
    %v1043 = vunpack.c.l.b16 %v832
    %v1044 = vunpack.c.h.b16 %v832
    %v1045 = vunpack.c.l.b16 %v833
    %v1046 = vunpack.c.l.b16 %v834
    %v1047 = vunpack.c.h.b16 %v834
    %v1048 = vunpack.c.l.b16 %v835
    %v1049 = vunpack.c.l.b16 %v836
    %v1050 = vunpack.c.h.b16 %v836
    %v1051 = vunpack.c.l.b16 %v837
    %v1052 = vunpack.c.l.b16 %v838
    %v1053 = vunpack.c.h.b16 %v838
    %v1054 = vunpack.c.l.b16 %v839
    %v1055 = vunpack.c.l.b16 %v840
    %v1056 = vunpack.c.h.b16 %v840
    %v1057 = vunpack.c.l.b16 %v841
    %v1058 = vunpack.c.l.b16 %v842
    %v1059 = vunpack.c.h.b16 %v842
    %v1060 = vunpack.c.l.b16 %v843
    %v1061 = vunpack.c.l.b16 %v844
    %v1062 = vunpack.c.h.b16 %v844
    %v1063 = vunpack.c.l.b16 %v845
    %v1064 = vunpack.c.l.b16 %v846
    %v1065 = vunpack.c.h.b16 %v846
    %v1066 = vunpack.c.l.b16 %v847
    %v1067 = vunpack.c.l.b16 %v848
    %v1068 = vunpack.c.h.b16 %v848
    %v1069 = vunpack.c.l.b16 %v849
    %v1070 = vunpack.c.l.b16 %v850
    %v1071 = vunpack.c.h.b16 %v850
    %v1072 = vunpack.c.l.b16 %v851
    %v1073 = vunpack.c.l.b16 %v852
    %v1074 = vunpack.c.h.b16 %v852
    %v1075 = vunpack.c.l.b16 %v853
    %v1076 = vunpack.c.l.b16 %v854
    %v1077 = vunpack.c.h.b16 %v854
    %v1078 = vunpack.c.l.b16 %v855
    %v1079 = vunpack.c.l.b16 %v856
    %v1080 = vunpack.c.h.b16 %v856
    %v1081 = vunpack.c.l.b16 %v857
    %v1082 = vunpack.c.l.b16 %v858
    %v1083 = vunpack.c.h.b16 %v858
    %v1084 = vunpack.c.l.b16 %v859
    %v1085 = vunpack.c.l.b16 %v860
    %v1086 = vunpack.c.h.b16 %v860
    %v1087 = vunpack.c.l.b16 %v861
    %v1088 = vunpack.c.l.b16 %v862
    %v1089 = vunpack.c.h.b16 %v862
    %v1090 = vunpack.c.l.b16 %v863
    %v1091 = vunpack.c.l.b16 %v864
    %v1092 = vunpack.c.h.b16 %v864
    %v1093 = vunpack.c.l.b16 %v865
    %v1094 = vunpack.c.l.b16 %v866
    %v1095 = vunpack.c.h.b16 %v866
    %v1096 = vunpack.c.l.b16 %v867
    %v1097 = vunpack.c.l.b16 %v868
    %v1098 = vunpack.c.h.b16 %v868
    %v1099 = vunpack.c.l.b16 %v869
    %v1100 = vunpack.c.l.b16 %v870
    %v1101 = vunpack.c.h.b16 %v870
    %v1102 = vunpack.c.l.b16 %v871
    %v1103 = vunpack.c.l.b16 %v872
    %v1104 = vunpack.c.h.b16 %v872
    %v1105 = vunpack.c.l.b16 %v873
    %v1106 = vunpack.c.l.b16 %v874
    %v1107 = vunpack.c.h.b16 %v874
    %v1108 = vunpack.c.l.b16 %v875
    %v1109 = vunpack.c.l.b16 %v876
    %v1110 = vunpack.c.h.b16 %v876
    %v1111 = vunpack.c.l.b16 %v877
    %v1112 = vunpack.c.l.b16 %v878
    %v1113 = vunpack.c.h.b16 %v878
    %v1114 = vunpack.c.l.b16 %v879
    %v1115 = vunpack.c.l.b16 %v880
    %v1116 = vunpack.c.h.b16 %v880
    %v1117 = vunpack.c.l.b16 %v881
    %v1118 = vunpack.c.l.b16 %v882
    %v1119 = vunpack.c.h.b16 %v882
    %v1120 = vunpack.c.l.b16 %v883
    %v1121 = vunpack.c.l.b16 %v884
    %v1122 = vunpack.c.h.b16 %v884
    %v1123 = vunpack.c.l.b16 %v885
    %v1124 = vunpack.c.l.b16 %v886
    %v1125 = vunpack.c.h.b16 %v886
    %v1126 = vunpack.c.l.b16 %v887
    %v1127 = vunpack.c.l.b16 %v888
    %v1128 = vunpack.c.h.b16 %v888
    %v1129 = vunpack.c.l.b16 %v889
    %v1130 = vunpack.c.l.b16 %v890
    %v1131 = vunpack.c.h.b16 %v890
    %v1132 = vunpack.c.l.b16 %v891
    %v1133 = vunpack.c.l.b16 %v892
    %v1134 = vunpack.c.h.b16 %v892
    %v1135 = vunpack.c.l.b16 %v893
    %v1136 = vunpack.c.l.b16 %v894
    %v1137 = vunpack.c.h.b16 %v894
    %v1138 = vunpack.c.l.b16 %v895
    %v1139 = vunpack.c.l.b16 %v896
    %v1140 = vunpack.c.h.b16 %v896
    %v1141 = vunpack.c.l.b16 %v897
    %v1142 = vunpack.c.l.b16 %v898
    %v1143 = vunpack.c.h.b16 %v898
    %v1144 = vunpack.c.l.b16 %v899
    %v1145 = vunpack.c.l.b16 %v900
    %v1146 = vunpack.c.h.b16 %v900
    %v1147 = vunpack.c.l.b16 %v901
    %v1148 = vunpack.c.l.b16 %v902
    %v1149 = vunpack.c.h.b16 %v902
    %v1150 = vunpack.c.l.b16 %v903
    %v1151 = vunpack.c.l.b16 %v904
    %v1152 = vunpack.c.h.b16 %v904
    %v1153 = vunpack.c.l.b16 %v905
    %v1154 = vunpack.c.l.b16 %v906
    %v1155 = vunpack.c.h.b16 %v906
    %v1156 = vunpack.c.l.b16 %v907
    %v1157 = vpack.c.b16 %v1016, %v1013
    %v1158 = vpack.c.b16 %v1017, %v1014
    %v1159 = vpack.c.b16 %v1018, %v1015
    %v1160 = vpack.c.b16 %v1022, %v1019
    %v1161 = vpack.c.b16 %v1023, %v1020
    %v1162 = vpack.c.b16 %v1024, %v1021
    %v1163 = vpack.c.b16 %v1028, %v1025
    %v1164 = vpack.c.b16 %v1029, %v1026
    %v1165 = vpack.c.b16 %v1030, %v1027
    %v1166 = vpack.c.b16 %v1034, %v1031
    %v1167 = vpack.c.b16 %v1035, %v1032
    %v1168 = vpack.c.b16 %v1036, %v1033
    %v1169 = vpack.c.b16 %v1040, %v1037
    %v1170 = vpack.c.b16 %v1041, %v1038
    %v1171 = vpack.c.b16 %v1042, %v1039
    %v1172 = vpack.c.b16 %v1046, %v1043
    %v1173 = vpack.c.b16 %v1047, %v1044
    %v1174 = vpack.c.b16 %v1048, %v1045
    %v1175 = vpack.c.b16 %v1052, %v1049
    %v1176 = vpack.c.b16 %v1053, %v1050
    %v1177 = vpack.c.b16 %v1054, %v1051
    %v1178 = vpack.c.b16 %v1058, %v1055
    %v1179 = vpack.c.b16 %v1059, %v1056
    %v1180 = vpack.c.b16 %v1060, %v1057
    %v1181 = vpack.c.b16 %v1064, %v1061
    %v1182 = vpack.c.b16 %v1065, %v1062
    %v1183 = vpack.c.b16 %v1066, %v1063
    %v1184 = vpack.c.b16 %v1070, %v1067
    %v1185 = vpack.c.b16 %v1071, %v1068
    %v1186 = vpack.c.b16 %v1072, %v1069
    %v1187 = vpack.c.b16 %v1076, %v1073
    %v1188 = vpack.c.b16 %v1077, %v1074
    %v1189 = vpack.c.b16 %v1078, %v1075
    %v1190 = vpack.c.b16 %v1082, %v1079
    %v1191 = vpack.c.b16 %v1083, %v1080
    %v1192 = vpack.c.b16 %v1084, %v1081
    %v1193 = vpack.c.b16 %v1088, %v1085
    %v1194 = vpack.c.b16 %v1089, %v1086
    %v1195 = vpack.c.b16 %v1090, %v1087
    %v1196 = vpack.c.b16 %v1094, %v1091
    %v1197 = vpack.c.b16 %v1095, %v1092
    %v1198 = vpack.c.b16 %v1096, %v1093
    %v1199 = vpack.c.b16 %v1100, %v1097
    %v1200 = vpack.c.b16 %v1101, %v1098
    %v1201 = vpack.c.b16 %v1102, %v1099
    %v1202 = vpack.c.b16 %v1106, %v1103
    %v1203 = vpack.c.b16 %v1107, %v1104
    %v1204 = vpack.c.b16 %v1108, %v1105
    %v1205 = vpack.c.b16 %v1112, %v1109
    %v1206 = vpack.c.b16 %v1113, %v1110
    %v1207 = vpack.c.b16 %v1114, %v1111
    %v1208 = vpack.c.b16 %v1118, %v1115
    %v1209 = vpack.c.b16 %v1119, %v1116
    %v1210 = vpack.c.b16 %v1120, %v1117
    %v1211 = vpack.c.b16 %v1124, %v1121
    %v1212 = vpack.c.b16 %v1125, %v1122
    %v1213 = vpack.c.b16 %v1126, %v1123
    %v1214 = vpack.c.b16 %v1130, %v1127
    %v1215 = vpack.c.b16 %v1131, %v1128
    %v1216 = vpack.c.b16 %v1132, %v1129
    %v1217 = vpack.c.b16 %v1136, %v1133
    %v1218 = vpack.c.b16 %v1137, %v1134
    %v1219 = vpack.c.b16 %v1138, %v1135
    %v1220 = vpack.c.b16 %v1142, %v1139
    %v1221 = vpack.c.b16 %v1143, %v1140
    %v1222 = vpack.c.b16 %v1144, %v1141
    %v1223 = vpack.c.b16 %v1148, %v1145
    %v1224 = vpack.c.b16 %v1149, %v1146
    %v1225 = vpack.c.b16 %v1150, %v1147
    %v1226 = vpack.c.b16 %v1154, %v1151
    %v1227 = vpack.c.b16 %v1155, %v1152
    %v1228 = vpack.c.b16 %v1156, %v1153
    %1301 = vmatpush.bf16.msra.mxu0 %v1178
    %1302 = vmatpush.bf16.msra.mxu0 %v1175
    %1303 = vmatpush.bf16.msra.mxu0 %v1172
    %1304 = vmatpush.bf16.msra.mxu0 %v1169
    %1305 = vmatpush.bf16.msra.mxu0 %v1166
    %1306 = vmatpush.bf16.msra.mxu0 %v1163
    %1307 = vmatpush.bf16.msra.mxu0 %v1160
    %1308 = vmatpush.bf16.msra.mxu0 %v1157
    %1309 = vmatmul.bf16.gmra.mxu0 %v809
    %v1310 = vpop.f32.mrf.mxu0
    %v1311 = vadd.f32 %v914, %v1310
    %v1312 = vpop.f32.mrf.mxu0
    %1313 = vdwg.mxu0
    %1314 = vmatpush.bf16.msra.mxu0 %v1202
    %1315 = vmatpush.bf16.msra.mxu0 %v1199
    %1316 = vmatpush.bf16.msra.mxu0 %v1196
    %1317 = vmatpush.bf16.msra.mxu0 %v1193
    %1318 = vmatpush.bf16.msra.mxu0 %v1190
    %1319 = vmatpush.bf16.msra.mxu0 %v1187
    %1320 = vmatpush.bf16.msra.mxu0 %v1184
    %1321 = vmatpush.bf16.msra.mxu0 %v1181
    %1322 = vmatmul.bf16.gmra.mxu0 %v810
    %v1323 = vpop.f32.mrf.mxu0
    %v1324 = vadd.f32 %v1311, %v1323
    %v1325 = vpop.f32.mrf.mxu0
    %1326 = vdwg.mxu0
    %1327 = vmatpush.bf16.msra.mxu0 %v1226
    %1328 = vmatpush.bf16.msra.mxu0 %v1223
    %1329 = vmatpush.bf16.msra.mxu0 %v1220
    %1330 = vmatpush.bf16.msra.mxu0 %v1217
    %1331 = vmatpush.bf16.msra.mxu0 %v1214
    %1332 = vmatpush.bf16.msra.mxu0 %v1211
    %1333 = vmatpush.bf16.msra.mxu0 %v1208
    %1334 = vmatpush.bf16.msra.mxu0 %v1205
    %1335 = vmatmul.bf16.gmra.mxu0 %v811
    %v1336 = vpop.f32.mrf.mxu0
    %v1337 = vadd.f32 %v1324, %v1336
    %v1338 = vpop.f32.mrf.mxu0
    %1339 = vdwg.mxu0
    %1340 = vmatpush.bf16.msra.mxu0 %v1179
    %1341 = vmatpush.bf16.msra.mxu0 %v1176
    %1342 = vmatpush.bf16.msra.mxu0 %v1173
    %1343 = vmatpush.bf16.msra.mxu0 %v1170
    %1344 = vmatpush.bf16.msra.mxu0 %v1167
    %1345 = vmatpush.bf16.msra.mxu0 %v1164
    %1346 = vmatpush.bf16.msra.mxu0 %v1161
    %1347 = vmatpush.bf16.msra.mxu0 %v1158
    %1348 = vmatmul.bf16.gmra.mxu0 %v809
    %v1349 = vpop.f32.mrf.mxu0
    %v1350 = vadd.f32 %v915, %v1349
    %v1351 = vpop.f32.mrf.mxu0
    %1352 = vdwg.mxu0
    %1353 = vmatpush.bf16.msra.mxu0 %v1203
    %1354 = vmatpush.bf16.msra.mxu0 %v1200
    %1355 = vmatpush.bf16.msra.mxu0 %v1197
    %1356 = vmatpush.bf16.msra.mxu0 %v1194
    %1357 = vmatpush.bf16.msra.mxu0 %v1191
    %1358 = vmatpush.bf16.msra.mxu0 %v1188
    %1359 = vmatpush.bf16.msra.mxu0 %v1185
    %1360 = vmatpush.bf16.msra.mxu0 %v1182
    %1361 = vmatmul.bf16.gmra.mxu0 %v810
    %v1362 = vpop.f32.mrf.mxu0
    %v1363 = vadd.f32 %v1350, %v1362
    %v1364 = vpop.f32.mrf.mxu0
    %1365 = vdwg.mxu0
    %1366 = vmatpush.bf16.msra.mxu0 %v1227
    %1367 = vmatpush.bf16.msra.mxu0 %v1224
    %1368 = vmatpush.bf16.msra.mxu0 %v1221
    %1369 = vmatpush.bf16.msra.mxu0 %v1218
    %1370 = vmatpush.bf16.msra.mxu0 %v1215
    %1371 = vmatpush.bf16.msra.mxu0 %v1212
    %1372 = vmatpush.bf16.msra.mxu0 %v1209
    %1373 = vmatpush.bf16.msra.mxu0 %v1206
    %1374 = vmatmul.bf16.gmra.mxu0 %v811
    %v1375 = vpop.f32.mrf.mxu0
    %v1376 = vadd.f32 %v1363, %v1375
    %v1377 = vpop.f32.mrf.mxu0
    %1378 = vdwg.mxu0
    %1379 = vmatpush.bf16.msra.mxu0 %v1180
    %1380 = vmatpush.bf16.msra.mxu0 %v1177
    %1381 = vmatpush.bf16.msra.mxu0 %v1174
    %1382 = vmatpush.bf16.msra.mxu0 %v1171
    %1383 = vmatpush.bf16.msra.mxu0 %v1168
    %1384 = vmatpush.bf16.msra.mxu0 %v1165
    %1385 = vmatpush.bf16.msra.mxu0 %v1162
    %1386 = vmatpush.bf16.msra.mxu0 %v1159
    %1387 = vmatmul.bf16.gmra.mxu0 %v809
    %v1388 = vpop.f32.mrf.mxu0
    %v1389 = vadd.f32 %v916, %v1388
    %v1390 = vpop.f32.mrf.mxu0
    %1391 = vdwg.mxu0
    %1392 = vmatpush.bf16.msra.mxu0 %v1204
    %1393 = vmatpush.bf16.msra.mxu0 %v1201
    %1394 = vmatpush.bf16.msra.mxu0 %v1198
    %1395 = vmatpush.bf16.msra.mxu0 %v1195
    %1396 = vmatpush.bf16.msra.mxu0 %v1192
    %1397 = vmatpush.bf16.msra.mxu0 %v1189
    %1398 = vmatpush.bf16.msra.mxu0 %v1186
    %1399 = vmatpush.bf16.msra.mxu0 %v1183
    %1400 = vmatmul.bf16.gmra.mxu0 %v810
    %v1401 = vpop.f32.mrf.mxu0
    %v1402 = vadd.f32 %v1389, %v1401
    %v1403 = vpop.f32.mrf.mxu0
    %1404 = vdwg.mxu0
    %1405 = vmatpush.bf16.msra.mxu0 %v1228
    %1406 = vmatpush.bf16.msra.mxu0 %v1225
    %1407 = vmatpush.bf16.msra.mxu0 %v1222
    %1408 = vmatpush.bf16.msra.mxu0 %v1219
    %1409 = vmatpush.bf16.msra.mxu0 %v1216
    %1410 = vmatpush.bf16.msra.mxu0 %v1213
    %1411 = vmatpush.bf16.msra.mxu0 %v1210
    %1412 = vmatpush.bf16.msra.mxu0 %v1207
    %1413 = vmatmul.bf16.gmra.mxu0 %v811
    %v1414 = vpop.f32.mrf.mxu0
    %v1415 = vadd.f32 %v1402, %v1414
    %v1416 = vpop.f32.mrf.mxu0
    %1417 = vdwg.mxu0
    %v1418 = vmax.f32 %v1337, 0.0
    %v1419 = vmax.f32 %v1376, 0.0
    %v1420 = vmax.f32 %v1415, 0.0
    %v1421 = vpack.c.bf16 %v1418, %v1418
    %v1422 = vpack.c.bf16 %v1419, %v1419
    %v1423 = vpack.c.bf16 %v1420, %v1420
    %v1424 = vld [vmem:[%s4] sm:$0xf]
    %v1425 = vld [vmem:[%s4 + $0x4] sm:$0xf]
    %v1426 = vld [vmem:[%s4 + $0x8] sm:$0xf]
    %v1427 = vld [vmem:[%s4 + $0xc] sm:$0xf]
    %v1428 = vld [vmem:[%s4 + $0x10] sm:$0xf]
    %v1429 = vld [vmem:[%s4 + $0x14] sm:$0xf]
    %v1430 = vld [vmem:[%s4 + $0x18] sm:$0xf]
    %v1431 = vld [vmem:[%s4 + $0x1c] sm:$0xf]
    %v1432 = vld [vmem:[%s4 + $0x20] sm:$0xf]
    %v1433 = vld [vmem:[%s4 + $0x24] sm:$0xf]
    %v1434 = vld [vmem:[%s4 + $0x28] sm:$0xf]
    %v1435 = vld [vmem:[%s4 + $0x2c] sm:$0xf]
    %v1436 = vld [vmem:[%s4 + $0x30] sm:$0xf]
    %v1437 = vld [vmem:[%s4 + $0x34] sm:$0xf]
    %v1438 = vld [vmem:[%s4 + $0x38] sm:$0xf]
    %v1439 = vld [vmem:[%s4 + $0x3c] sm:$0xf]
    %v1440 = vld [vmem:[%s4 + $0x40] sm:$0xf]
    %v1441 = vld [vmem:[%s4 + $0x44] sm:$0xf]
    %v1442 = vld [vmem:[%s4 + $0x48] sm:$0xf]
    %v1443 = vld [vmem:[%s4 + $0x4c] sm:$0xf]
    %v1444 = vld [vmem:[%s4 + $0x50] sm:$0xf]
    %v1445 = vld [vmem:[%s4 + $0x54] sm:$0xf]
    %v1446 = vld [vmem:[%s4 + $0x58] sm:$0xf]
    %v1447 = vld [vmem:[%s4 + $0x5c] sm:$0xf]
    %v1448 = vld [vmem:[%s4 + $0x60] sm:$0xf]
    %v1449 = vld [vmem:[%s4 + $0x64] sm:$0xf]
    %v1450 = vld [vmem:[%s4 + $0x68] sm:$0xf]
    %v1451 = vld [vmem:[%s4 + $0x6c] sm:$0xf]
    %v1452 = vld [vmem:[%s4 + $0x70] sm:$0xf]
    %v1453 = vld [vmem:[%s4 + $0x74] sm:$0xf]
    %v1454 = vld [vmem:[%s4 + $0x78] sm:$0xf]
    %v1455 = vld [vmem:[%s4 + $0x7c] sm:$0xf]
    %v1456 = vld [vmem:[%s4 + $0x80] sm:$0xf]
    %v1457 = vld [vmem:[%s4 + $0x84] sm:$0xf]
    %v1458 = vld [vmem:[%s4 + $0x88] sm:$0xf]
    %v1459 = vld [vmem:[%s4 + $0x8c] sm:$0xf]
    %v1460 = vld [vmem:[%s4 + $0x90] sm:$0xf]
    %v1461 = vld [vmem:[%s4 + $0x94] sm:$0xf]
    %v1462 = vld [vmem:[%s4 + $0x98] sm:$0xf]
    %v1463 = vld [vmem:[%s4 + $0x9c] sm:$0xf]
    %v1464 = vld [vmem:[%s4 + $0xa0] sm:$0xf]
    %v1465 = vld [vmem:[%s4 + $0xa4] sm:$0xf]
    %v1466 = vld [vmem:[%s4 + $0xa8] sm:$0xf]
    %v1467 = vld [vmem:[%s4 + $0xac] sm:$0xf]
    %v1468 = vld [vmem:[%s4 + $0xb0] sm:$0xf]
    %v1469 = vld [vmem:[%s4 + $0xb4] sm:$0xf]
    %v1470 = vld [vmem:[%s4 + $0xb8] sm:$0xf]
    %v1471 = vld [vmem:[%s4 + $0xbc] sm:$0xf]
    %v1472 = vperm.slane %v58, 3
    %v1521 = vunpack.c.l.b16 %v1424
    %v1522 = vunpack.c.l.b16 %v1425
    %v1523 = vunpack.c.l.b16 %v1426
    %v1524 = vunpack.c.l.b16 %v1427
    %v1525 = vunpack.c.l.b16 %v1428
    %v1526 = vunpack.c.l.b16 %v1429
    %v1527 = vunpack.c.l.b16 %v1430
    %v1528 = vunpack.c.l.b16 %v1431
    %v1529 = vunpack.c.l.b16 %v1432
    %v1530 = vunpack.c.l.b16 %v1433
    %v1531 = vunpack.c.l.b16 %v1434
    %v1532 = vunpack.c.l.b16 %v1435
    %v1533 = vunpack.c.l.b16 %v1436
    %v1534 = vunpack.c.l.b16 %v1437
    %v1535 = vunpack.c.l.b16 %v1438
    %v1536 = vunpack.c.l.b16 %v1439
    %v1537 = vunpack.c.l.b16 %v1440
    %v1538 = vunpack.c.l.b16 %v1441
    %v1539 = vunpack.c.l.b16 %v1442
    %v1540 = vunpack.c.l.b16 %v1443
    %v1541 = vunpack.c.l.b16 %v1444
    %v1542 = vunpack.c.l.b16 %v1445
    %v1543 = vunpack.c.l.b16 %v1446
    %v1544 = vunpack.c.l.b16 %v1447
    %v1545 = vunpack.c.l.b16 %v1448
    %v1546 = vunpack.c.l.b16 %v1449
    %v1547 = vunpack.c.l.b16 %v1450
    %v1548 = vunpack.c.l.b16 %v1451
    %v1549 = vunpack.c.l.b16 %v1452
    %v1550 = vunpack.c.l.b16 %v1453
    %v1551 = vunpack.c.l.b16 %v1454
    %v1552 = vunpack.c.l.b16 %v1455
    %v1553 = vunpack.c.l.b16 %v1456
    %v1554 = vunpack.c.l.b16 %v1457
    %v1555 = vunpack.c.l.b16 %v1458
    %v1556 = vunpack.c.l.b16 %v1459
    %v1557 = vunpack.c.l.b16 %v1460
    %v1558 = vunpack.c.l.b16 %v1461
    %v1559 = vunpack.c.l.b16 %v1462
    %v1560 = vunpack.c.l.b16 %v1463
    %v1561 = vunpack.c.l.b16 %v1464
    %v1562 = vunpack.c.l.b16 %v1465
    %v1563 = vunpack.c.l.b16 %v1466
    %v1564 = vunpack.c.l.b16 %v1467
    %v1565 = vunpack.c.l.b16 %v1468
    %v1566 = vunpack.c.l.b16 %v1469
    %v1567 = vunpack.c.l.b16 %v1470
    %v1568 = vunpack.c.l.b16 %v1471
    %v1569 = vpack.c.b16 %v1522, %v1521
    %v1570 = vpack.c.b16 %v1524, %v1523
    %v1571 = vpack.c.b16 %v1526, %v1525
    %v1572 = vpack.c.b16 %v1528, %v1527
    %v1573 = vpack.c.b16 %v1530, %v1529
    %v1574 = vpack.c.b16 %v1532, %v1531
    %v1575 = vpack.c.b16 %v1534, %v1533
    %v1576 = vpack.c.b16 %v1536, %v1535
    %v1577 = vpack.c.b16 %v1538, %v1537
    %v1578 = vpack.c.b16 %v1540, %v1539
    %v1579 = vpack.c.b16 %v1542, %v1541
    %v1580 = vpack.c.b16 %v1544, %v1543
    %v1581 = vpack.c.b16 %v1546, %v1545
    %v1582 = vpack.c.b16 %v1548, %v1547
    %v1583 = vpack.c.b16 %v1550, %v1549
    %v1584 = vpack.c.b16 %v1552, %v1551
    %v1585 = vpack.c.b16 %v1554, %v1553
    %v1586 = vpack.c.b16 %v1556, %v1555
    %v1587 = vpack.c.b16 %v1558, %v1557
    %v1588 = vpack.c.b16 %v1560, %v1559
    %v1589 = vpack.c.b16 %v1562, %v1561
    %v1590 = vpack.c.b16 %v1564, %v1563
    %v1591 = vpack.c.b16 %v1566, %v1565
    %v1592 = vpack.c.b16 %v1568, %v1567
    %1617 = vmatpush.bf16.msra.mxu0 %v1576
    %1618 = vmatpush.bf16.msra.mxu0 %v1575
    %1619 = vmatpush.bf16.msra.mxu0 %v1574
    %1620 = vmatpush.bf16.msra.mxu0 %v1573
    %1621 = vmatpush.bf16.msra.mxu0 %v1572
    %1622 = vmatpush.bf16.msra.mxu0 %v1571
    %1623 = vmatpush.bf16.msra.mxu0 %v1570
    %1624 = vmatpush.bf16.msra.mxu0 %v1569
    %1625 = vmatmul.bf16.gmra.mxu0 %v1421
    %v1626 = vpop.f32.mrf.mxu0
    %v1627 = vadd.f32 %v1472, %v1626
    %v1628 = vpop.f32.mrf.mxu0
    %1629 = vdwg.mxu0
    %1630 = vmatpush.bf16.msra.mxu0 %v1584
    %1631 = vmatpush.bf16.msra.mxu0 %v1583
    %1632 = vmatpush.bf16.msra.mxu0 %v1582
    %1633 = vmatpush.bf16.msra.mxu0 %v1581
    %1634 = vmatpush.bf16.msra.mxu0 %v1580
    %1635 = vmatpush.bf16.msra.mxu0 %v1579
    %1636 = vmatpush.bf16.msra.mxu0 %v1578
    %1637 = vmatpush.bf16.msra.mxu0 %v1577
    %1638 = vmatmul.bf16.gmra.mxu0 %v1422
    %v1639 = vpop.f32.mrf.mxu0
    %v1640 = vadd.f32 %v1627, %v1639
    %v1641 = vpop.f32.mrf.mxu0
    %1642 = vdwg.mxu0
    %1643 = vmatpush.bf16.msra.mxu0 %v1592
    %1644 = vmatpush.bf16.msra.mxu0 %v1591
    %1645 = vmatpush.bf16.msra.mxu0 %v1590
    %1646 = vmatpush.bf16.msra.mxu0 %v1589
    %1647 = vmatpush.bf16.msra.mxu0 %v1588
    %1648 = vmatpush.bf16.msra.mxu0 %v1587
    %1649 = vmatpush.bf16.msra.mxu0 %v1586
    %1650 = vmatpush.bf16.msra.mxu0 %v1585
    %1651 = vmatmul.bf16.gmra.mxu0 %v1423
    %v1652 = vpop.f32.mrf.mxu0
    %v1653 = vadd.f32 %v1640, %v1652
    %v1654 = vpop.f32.mrf.mxu0
    %1655 = vdwg.mxu0
    %vm1656 = vcmask 31744
    %1657 = vst.msk [vmem:[%s6] sm:$0xff] %vm1656, %v1653
    // Predicated region
    $region34: #{tpu_custom_call.1} parent=1 // pred_check
      _
    $region35: #{tpu_custom_call.1} parent=1 // pred_check_branch
      %1659 = sbr.rel (0) target = $region37
    $region36: #{tpu_custom_call.1} parent=1 // pred_region
      _
    $region37: #{tpu_custom_call.1} parent=1 // pred_fallthru
      _
    // Predicated region
    $region38: #{tpu_custom_call.1} parent=1 // pred_check
      _
    $region39: #{tpu_custom_call.1} parent=1 // pred_check_branch
      %1661 = sbr.rel (0) target = $region41
    $region40: #{tpu_custom_call.1} parent=1 // pred_region
      _
    $region41: #{tpu_custom_call.1} parent=1 // pred_fallthru
      _
    %1662 = vsyncpa [#allocation3], 1
    %1663 = vsyncpa [#allocation5], 1

</llo_original>
